<compile_context>
chip_gen: v6e
topology: v6e:2x2x1
jax: 0.10.0
libtpu: 0.0.40
codegen_flags: <defaults>
</compile_context>

<pallas_src>
import numpy as np
import jax
import jax.numpy as jnp
from jax.experimental import pallas as pl
from jax.experimental.pallas import tpu as pltpu

_NUM_CORES = 2  # "parallel" grid axis; uses both TCs on v7x, serial elsewhere


def _cdiv(a, b):
    return -(-a // b)


def _round_up(v, m):
    return _cdiv(v, m) * m


def _bicubic_matrix(out_size, in_size, a=-0.75):
    """(out_size, in_size) matrix reproducing PyTorch's bicubic interpolation
    along one axis (mode='bicubic', align_corners=True, antialias=False;
    cubic convolution a=-0.75 with clamped boundary indices)."""
    scale = (in_size - 1) / (out_size - 1) if out_size > 1 else 0.0
    src = np.arange(out_size) * scale
    fl = np.floor(src).astype(np.int64)
    t = src - fl

    def cubic(x):
        x = np.abs(x)
        return np.where(
            x <= 1.0,
            (a + 2.0) * x ** 3 - (a + 3.0) * x ** 2 + 1.0,
            np.where(x < 2.0,
                     a * x ** 3 - 5.0 * a * x ** 2 + 8.0 * a * x - 4.0 * a,
                     0.0))

    W = np.zeros((out_size, in_size), dtype=np.float64)
    for k in range(-1, 3):
        idx = np.clip(fl + k, 0, in_size - 1)
        w = cubic(t - k)
        for r in range(out_size):
            W[r, idx[r]] += w[r]
    return jnp.asarray(W, dtype=jnp.float32)


def _bp_loss_kernel(bt_ref, at_ref, x_ref, y_ref, out_ref, acc_ref):
    j = pl.program_id(1)

    @pl.when(j == 0)
    def _():
        acc_ref[...] = jnp.zeros_like(acc_ref)

    bc, hin, win = x_ref.shape
    hout = at_ref.shape[1]
    wout = bt_ref.shape[1]

    x = x_ref[...]                                           # (BC, Hin, Win)
    # W-contraction: one big MXU matmul (M = BC*Hin).
    t = jnp.dot(x.reshape(bc * hin, win), bt_ref[...],
                preferred_element_type=jnp.float32)          # (BC*Hin, Wout)
    # H-contraction: swap the minor dims of the (scale^2-smaller) intermediate,
    # then another single big 2-D matmul (M = BC*Wout).
    t = jnp.transpose(t.reshape(bc, hin, wout), (0, 2, 1))   # (BC, Wout, Hin)
    z = jnp.dot(t.reshape(bc * wout, hin), at_ref[...],
                preferred_element_type=jnp.float32)          # (BC*Wout, Hout)

    # Element-wise accumulation; reduction deferred to the epilogue.
    acc_ref[...] += jnp.abs(z - y_ref[...])

    @pl.when(j == pl.num_programs(1) - 1)
    def _():
        out_ref[...] = jnp.sum(acc_ref[...]).reshape(1, 1, 1)


def back_projection_loss(x, y, scale_factor=4):
    N, C, Hin, Win = x.shape
    Ny, Cy, Hout, Wout = y.shape
    assert Hin == Hout * scale_factor
    assert Win == Wout * scale_factor
    assert (N, C) == (Ny, Cy)

    x = x.astype(jnp.float32)
    y = y.astype(jnp.float32)

    At = _bicubic_matrix(Hout, Hin).T        # (Hin, Hout)
    Bt = _bicubic_matrix(Wout, Win).T        # (Win, Wout)

    nc = N * C

    # ---- choose the per-step channel batch BC (multiple of 8) --------------
    slice_bytes = Hin * Win * 4
    bc = (6 * 1024 * 1024) // (2 * slice_bytes)   # double-buffered x <= ~6 MiB
    bc = int(max(8, min(128, bc)))
    bc = _round_up(bc, 8)
    bc = min(bc, _round_up(_cdiv(nc, _NUM_CORES), 8))   # no pointless padding
    npc = _cdiv(nc, _NUM_CORES * bc)                    # blocks per core
    nc_pad = _NUM_CORES * npc * bc

    xf = x.reshape(nc, Hin, Win)
    # y rearranged so it matches the kernel's (BC*Wout, Hout) result layout:
    # row index = channel*Wout + w_out, column = h_out.
    y2 = y.reshape(nc, Hout, Wout).transpose(0, 2, 1).reshape(nc * Wout, Hout)
    if nc_pad != nc:
        pad = nc_pad - nc                    # zero slices contribute |0-0|=0
        xf = jnp.pad(xf, ((0, pad), (0, 0), (0, 0)))
        y2 = jnp.pad(y2, ((0, pad * Wout), (0, 0)))

    total = nc * Hout * Wout
    flops = 2 * nc * Hin * Wout * (Win + Hout)
    bytes_accessed = 4 * (nc * Hin * Win + nc * Hout * Wout
                          + Win * Wout + Hin * Hout + _NUM_CORES)

    partials = pl.pallas_call(
        _bp_loss_kernel,
        out_shape=jax.ShapeDtypeStruct((_NUM_CORES, 1, 1), jnp.float32),
        grid_spec=pltpu.PrefetchScalarGridSpec(
            num_scalar_prefetch=0,
            grid=(_NUM_CORES, npc),
            in_specs=[
                pl.BlockSpec((Win, Wout), lambda c, j: (0, 0)),            # Bt
                pl.BlockSpec((Hin, Hout), lambda c, j: (0, 0)),            # At
                pl.BlockSpec((bc, Hin, Win),
                             lambda c, j: (c * npc + j, 0, 0)),            # x
                pl.BlockSpec((bc * Wout, Hout),
                             lambda c, j: (c * npc + j, 0)),               # y
            ],
            out_specs=pl.BlockSpec((1, 1, 1), lambda c, j: (c, 0, 0)),
            scratch_shapes=[pltpu.VMEM((bc * Wout, Hout), jnp.float32)],
        ),
        compiler_params=pltpu.CompilerParams(
            dimension_semantics=("parallel", "arbitrary"),
            vmem_limit_bytes=32 * 1024 * 1024),
        cost_estimate=pl.CostEstimate(
            flops=int(flops), transcendentals=0,
            bytes_accessed=int(bytes_accessed)),
    )(Bt, At, xf, y2)

    # Sum per-core partials and apply the mean scaling in the wrapper
    # (so each core's partial is not scaled independently).
    return jnp.sum(partials) * (1.0 / float(total))


if __name__ == "__main__":
    key = jax.random.PRNGKey(0)
    kx, ky = jax.random.split(key)

    N, C, Hlr, Wlr, sf = 2, 4, 8, 8, 4
    x = jax.random.normal(kx, (N, C, Hlr * sf, Wlr * sf), dtype=jnp.float32)
    y = jax.random.normal(ky, (N, C, Hlr, Wlr), dtype=jnp.float32)

    loss = back_projection_loss(x, y, scale_factor=sf)
    loss = jax.block_until_ready(loss)

    # pure-JAX reference (same separable bicubic matrices + mean abs diff)
    A = _bicubic_matrix(Hlr, Hlr * sf)
    B = _bicubic_matrix(Wlr, Wlr * sf)
    x_ds = jnp.einsum('oh,nchw,pw->ncop', A, x, B)
    ref = jnp.mean(jnp.abs(x_ds - y))

    assert np.allclose(np.asarray(loss), np.asarray(ref), rtol=1e-4, atol=1e-5), (
        f"mismatch: kernel={float(loss)} ref={float(ref)}")
    print("KERNEL_OK")
</pallas_src>

<mosaic_0001>
module attributes {stable_mosaic.version = 11 : i64} {
  func.func @_bp_loss_kernel(%arg0: i32, %arg1: i32, %arg2: memref<32x8xf32, #tpu.memory_space<vmem>>, %arg3: memref<32x8xf32, #tpu.memory_space<vmem>>, %arg4: memref<8x32x32xf32, #tpu.memory_space<vmem>>, %arg5: memref<64x8xf32, #tpu.memory_space<vmem>>, %arg6: memref<1x1x1xf32, #tpu.memory_space<vmem>>, %arg7: memref<64x8xf32, #tpu.memory_space<vmem>>) attributes {dimension_semantics = [#tpu.dimension_semantics<parallel>, #tpu.dimension_semantics<arbitrary>], iteration_bounds = array<i64: 2, 1>, scalar_prefetch = 0 : i64, scratch_operands = 1 : i64, tpu.core_type = #tpu.core_type<tc>, window_params = [{pipeline_mode = #tpu.pipeline_mode<synchronous>, transform_indices = @transform_0, window_bounds = array<i64: 32, 8>}, {pipeline_mode = #tpu.pipeline_mode<synchronous>, transform_indices = @transform_1, window_bounds = array<i64: 32, 8>}, {transform_indices = @transform_2, window_bounds = array<i64: 8, 32, 32>}, {transform_indices = @transform_3, window_bounds = array<i64: 64, 8>}, {transform_indices = @transform_4, window_bounds = array<i64: 1, 1, 1>}]} {
    %c0_i32 = arith.constant 0 : i32
    %0 = arith.cmpi eq, %arg1, %c0_i32 : i32
    %1 = arith.extui %0 : i1 to i32
    %c0_i32_0 = arith.constant 0 : i32
    %2 = arith.cmpi ne, %1, %c0_i32_0 : i32
    scf.if %2 {
      %cst_16 = arith.constant 0.000000e+00 : f32
      %21 = vector.broadcast %cst_16 : f32 to vector<64x8xf32>
      %c0_17 = arith.constant 0 : index
      %c0_18 = arith.constant 0 : index
      %22 = vector.load %arg7[%c0_17, %c0_18] : memref<64x8xf32, #tpu.memory_space<vmem>>, vector<64x8xf32>
      tpu.vector_store %arg7[%c0_17, %c0_18], %21 {strides = array<i32>} : memref<64x8xf32, #tpu.memory_space<vmem>>, vector<64x8xf32>,
    } else {
    }
    %c0 = arith.constant 0 : index
    %c0_1 = arith.constant 0 : index
    %c0_2 = arith.constant 0 : index
    %3 = vector.load %arg4[%c0, %c0_1, %c0_2] : memref<8x32x32xf32, #tpu.memory_space<vmem>>, vector<8x32x32xf32>
    %4 = vector.shape_cast %3 : vector<8x32x32xf32> to vector<256x32xf32>
    %c0_3 = arith.constant 0 : index
    %c0_4 = arith.constant 0 : index
    %5 = vector.load %arg2[%c0_3, %c0_4] : memref<32x8xf32, #tpu.memory_space<vmem>>, vector<32x8xf32>
    %cst = arith.constant dense<0.000000e+00> : vector<256x8xf32>
    %6 = tpu.matmul %4, %5, %cst {dimension_numbers = #tpu.dot_dimension_numbers<[1], [0], [0], [1], [0, 0, 1, 1], [], []>} : vector<256x32xf32>, vector<32x8xf32>, vector<256x8xf32> -> vector<256x8xf32>
    %7 = vector.shape_cast %6 : vector<256x8xf32> to vector<8x32x8xf32>
    %8 = tpu.transpose %7, [0, 2, 1] : vector<8x32x8xf32> -> vector<8x8x32xf32>
    %9 = vector.shape_cast %8 : vector<8x8x32xf32> to vector<64x32xf32>
    %c0_5 = arith.constant 0 : index
    %c0_6 = arith.constant 0 : index
    %10 = vector.load %arg3[%c0_5, %c0_6] : memref<32x8xf32, #tpu.memory_space<vmem>>, vector<32x8xf32>
    %cst_7 = arith.constant dense<0.000000e+00> : vector<64x8xf32>
    %11 = tpu.matmul %9, %10, %cst_7 {dimension_numbers = #tpu.dot_dimension_numbers<[1], [0], [0], [1], [0, 0, 1, 1], [], []>} : vector<64x32xf32>, vector<32x8xf32>, vector<64x8xf32> -> vector<64x8xf32>
    %c0_8 = arith.constant 0 : index
    %c0_9 = arith.constant 0 : index
    %12 = vector.load %arg7[%c0_8, %c0_9] : memref<64x8xf32, #tpu.memory_space<vmem>>, vector<64x8xf32>
    %c0_10 = arith.constant 0 : index
    %c0_11 = arith.constant 0 : index
    %13 = vector.load %arg5[%c0_10, %c0_11] : memref<64x8xf32, #tpu.memory_space<vmem>>, vector<64x8xf32>
    %14 = arith.subf %11, %13 : vector<64x8xf32>
    %15 = math.absf %14 : vector<64x8xf32>
    %16 = arith.addf %12, %15 : vector<64x8xf32>
    %c0_12 = arith.constant 0 : index
    %c0_13 = arith.constant 0 : index
    %17 = vector.load %arg7[%c0_12, %c0_13] : memref<64x8xf32, #tpu.memory_space<vmem>>, vector<64x8xf32>
    tpu.vector_store %arg7[%c0_12, %c0_13], %16 {strides = array<i32>} : memref<64x8xf32, #tpu.memory_space<vmem>>, vector<64x8xf32>,
    %c0_i32_14 = arith.constant 0 : i32
    %18 = arith.cmpi eq, %arg1, %c0_i32_14 : i32
    %19 = arith.extui %18 : i1 to i32
    %c0_i32_15 = arith.constant 0 : i32
    %20 = arith.cmpi ne, %19, %c0_i32_15 : i32
    scf.if %20 {
      %c0_16 = arith.constant 0 : index
      %c0_17 = arith.constant 0 : index
      %21 = vector.load %arg7[%c0_16, %c0_17] : memref<64x8xf32, #tpu.memory_space<vmem>>, vector<64x8xf32>
      %22 = vector.shape_cast %21 : vector<64x8xf32> to vector<1x64x8xf32>
      %cst_18 = arith.constant dense<0.000000e+00> : vector<1xf32>
      %23 = vector.multi_reduction <add>, %22, %cst_18 [1, 2] : vector<1x64x8xf32> to vector<1xf32>
      %24 = vector.shape_cast %23 : vector<1xf32> to vector<1x1x1xf32>
      %25 = vector.extract %24[0, 0, 0] : f32 from vector<1x1x1xf32>
      %26 = vector.broadcast %25 : f32 to vector<1x1x1xf32>
      %c0_19 = arith.constant 0 : index
      %c0_20 = arith.constant 0 : index
      %c0_21 = arith.constant 0 : index
      %27 = vector.load %arg6[%c0_19, %c0_20, %c0_21] : memref<1x1x1xf32, #tpu.memory_space<vmem>>, vector<1x1x1xf32>
      tpu.vector_store %arg6[%c0_19, %c0_20, %c0_21], %26 {strides = array<i32>} : memref<1x1x1xf32, #tpu.memory_space<vmem>>, vector<1x1x1xf32>,
    } else {
    }
    return
  }
  func.func @transform_0(%arg0: i32, %arg1: i32) -> (i32, i32) {
    %c0_i32 = arith.constant 0 : i32
    %c0_i32_0 = arith.constant 0 : i32
    %c0_i32_1 = arith.constant 0 : i32
    return %c0_i32, %c0_i32_0 : i32, i32
  }
  func.func @transform_1(%arg0: i32, %arg1: i32) -> (i32, i32) {
    %c0_i32 = arith.constant 0 : i32
    %c0_i32_0 = arith.constant 0 : i32
    %c0_i32_1 = arith.constant 0 : i32
    return %c0_i32, %c0_i32_0 : i32, i32
  }
  func.func @transform_2(%arg0: i32, %arg1: i32) -> (i32, i32, i32) {
    %c1_i32 = arith.constant 1 : i32
    %0 = arith.muli %arg0, %c1_i32 : i32
    %1 = arith.addi %0, %arg1 : i32
    %c0_i32 = arith.constant 0 : i32
    %c0_i32_0 = arith.constant 0 : i32
    %c0_i32_1 = arith.constant 0 : i32
    return %1, %c0_i32, %c0_i32_0 : i32, i32, i32
  }
  func.func @transform_3(%arg0: i32, %arg1: i32) -> (i32, i32) {
    %c1_i32 = arith.constant 1 : i32
    %0 = arith.muli %arg0, %c1_i32 : i32
    %1 = arith.addi %0, %arg1 : i32
    %c0_i32 = arith.constant 0 : i32
    %c0_i32_0 = arith.constant 0 : i32
    return %1, %c0_i32 : i32, i32
  }
  func.func @transform_4(%arg0: i32, %arg1: i32) -> (i32, i32, i32) {
    %c0_i32 = arith.constant 0 : i32
    %c0_i32_0 = arith.constant 0 : i32
    %c0_i32_1 = arith.constant 0 : i32
    return %arg0, %c0_i32, %c0_i32_0 : i32, i32, i32
  }
}

</mosaic_0001>

<llo_original>
// kernel: tpu_custom_call.1
$region0: #{tpu_custom_call.1}
  #allocation0 [shape = 'u32[]', space=smem, size = 0x4, offset = 0x4, fixed_abs, tag = 'smem constant byte address 0x4 - core index']
  #allocation1 [shape = 'u32[144,128]{1,0:T(1,128)}', space=vmem, size = 0x12000, scoped, tag = 'internal scratch']
  #allocation2 [shape = 'f32[64,8]{1,0:T(8,128)}', space=vmem, size = 0x8000, scoped, tag = 'scratch operand']
  %s0 = inlined_call_operand.vmem [shape: f32[32,8], index: 0, kind: input, shape index: {}]
  %s1 = inlined_call_operand.vmem [shape: f32[32,8], index: 1, kind: input, shape index: {}]
  %s2 = inlined_call_operand.hbm [shape: f32[16,32,32], index: 2, kind: input, shape index: {}]
  %s3 = inlined_call_operand.vmem [shape: f32[128,8], index: 3, kind: input, shape index: {}]
  %s4 = inlined_call_operand.vmem [shape: f32[2,1,1], index: 4, kind: output, shape index: {}]
  %s5 = sld [smem:[#allocation0]]
  $region61: #{tpu_custom_call.1} parent=0
    _
  %s7 = ssub.s32 1, %s5
  %s8 = scalar_select 0, %s7, %s5
  $region1: #{tpu_custom_call.1} parent=0
    #allocation3 [shape = 'u8[262144]{0}', space=vmem, size = 0x40000, scoped, tag = 'input window, operand 2']
    #allocation4 [shape = 's32[2]{0}', space=sflag, size = 0x8, scoped, tag = 'scoped memory for tpu_custom_call.1']
    %9 = vsyncpa [#allocation4], 0
    %s10 = scalar_lea.sflag [#allocation4], 1
    %11 = vsyncpa %s10, 0
    loop: start=0, step=1, limit=4
    $region2: #{tpu_custom_call.1} parent=1 // loop_pre_header
      _
    $region3: #{tpu_custom_call.1} parent=1 // loop_header
      %s13 = sphi 0, %s17
      %p14 = scmp.ge.s32.totalorder %s13, 4
      %s20 = sphi 0, %s32
      %s21 = sphi 0, %s28
      %s22 = sphi 0, %s20
      %s23 = sphi 0, %s21
      %s24 = sphi 0, %s22
      %s25 = sphi 0, %s23
      %s33 = sphi 0, %s33
      %s35 = sphi 0, %s33
      %s36 = sphi 0, %s35
      %s50 = sphi 0, %s36
      %s54 = sphi 0, %s54
      %s56 = sphi 0, %s54
      %s57 = sphi 0, %s56
      %s71 = sphi 0, %s57
      %s79 = sphi 0, %s81
      %s82 = sphi 0, %s79
      %s83 = sphi 0, %s82
      %s99 = sphi 0, %s83
      %s107 = sphi 0, %s109
      %s110 = sphi 0, %s107
      %s111 = sphi 0, %s110
      %s127 = sphi 0, %s111
      %s133 = sphi 0, %s135
      %s136 = sphi 0, %s133
      %s137 = sphi 0, %s136
      %s153 = sphi 0, %s137
    $region4: #{tpu_custom_call.1} parent=1 // loop_header_branch
      %16 = sbr.rel (%p14) target = $region8
    $region5: #{tpu_custom_call.1} parent=1 // loop_body
      %s18 = ssub.s32 %s13, 1
      %s19 = ssub.s32 %s13, 2
      %s26 = sadd.s32 1, %s21
      %p27 = scmp.ge.s32.totalorder %s26, 1
      %s28 = scalar_select %p27, 0, %s26
      %s29 = sadd.s32 1, %s20
      %s30 = scalar_select %p27, %s29, %s20
      %p31 = scmp.ge.s32.totalorder %s30, 2
      %s32 = scalar_select %p31, 0, %s30
      %s34 = sadd.s32 %s33, 1
      %p37 = scmp.eq.s32.totalorder %s13, 1
      %p38 = scmp.ne.s32.totalorder %s33, %s35
      %p39 = scmp.eq.s32.totalorder %s13, 0
      %p40 = por %p38, %p39
      %p41 = scmp.ne.s32.totalorder %s33, %s35
      %p42 = scmp.eq.s32.totalorder %s18, 1
      %p43 = por %p41, %p42
      %p44 = scmp.ne.s32.totalorder %s35, %s36
      %p45 = scmp.eq.s32.totalorder %s18, 0
      %p46 = por %p44, %p45
      %p47 = scmp.ne.s32.totalorder %s35, %s36
      %p48 = scmp.eq.s32.totalorder %s19, 1
      %p49 = por %p47, %p48
      %p51 = scmp.ne.s32.totalorder %s36, %s50
      %p52 = scmp.eq.s32.totalorder %s19, 0
      %p53 = por %p51, %p52
      %s55 = sadd.s32 %s54, 1
      %p58 = scmp.eq.s32.totalorder %s13, 1
      %p59 = scmp.ne.s32.totalorder %s54, %s56
      %p60 = scmp.eq.s32.totalorder %s13, 0
      %p61 = por %p59, %p60
      %p62 = scmp.ne.s32.totalorder %s54, %s56
      %p63 = scmp.eq.s32.totalorder %s18, 1
      %p64 = por %p62, %p63
      %p65 = scmp.ne.s32.totalorder %s56, %s57
      %p66 = scmp.eq.s32.totalorder %s18, 0
      %p67 = por %p65, %p66
      %p68 = scmp.ne.s32.totalorder %s56, %s57
      %p69 = scmp.eq.s32.totalorder %s19, 1
      %p70 = por %p68, %p69
      %p72 = scmp.ne.s32.totalorder %s57, %s71
      %p73 = scmp.eq.s32.totalorder %s19, 0
      %p74 = por %p72, %p73
      %s75 = sadd.s32 %s20, %s21
      %s76 = sadd.s32 %s32, %s28
      %s77 = ssub.s32 %s75, %s76
      %p78 = scmp.eq.s32.totalorder %s77, 0
      %s80 = sadd.s32 %s79, 1
      %s81 = scalar_select %p78, %s79, %s80
      %p84 = pneg %p78
      %p85 = scmp.eq.s32.totalorder %s13, 1
      %p86 = por %p84, %p85
      %p87 = scmp.ne.s32.totalorder %s79, %s82
      %p88 = scmp.eq.s32.totalorder %s13, 0
      %p89 = por %p87, %p88
      %p90 = scmp.ne.s32.totalorder %s79, %s82
      %p91 = scmp.eq.s32.totalorder %s18, 1
      %p92 = por %p90, %p91
      %p93 = scmp.ne.s32.totalorder %s82, %s83
      %p94 = scmp.eq.s32.totalorder %s18, 0
      %p95 = por %p93, %p94
      %p96 = scmp.ne.s32.totalorder %s82, %s83
      %p97 = scmp.eq.s32.totalorder %s19, 1
      %p98 = por %p96, %p97
      %p100 = scmp.ne.s32.totalorder %s83, %s99
      %p101 = scmp.eq.s32.totalorder %s19, 0
      %p102 = por %p100, %p101
      %s103 = sadd.s32 %s20, %s21
      %s104 = sadd.s32 %s32, %s28
      %s105 = ssub.s32 %s103, %s104
      %p106 = scmp.eq.s32.totalorder %s105, 0
      %s108 = sadd.s32 %s107, 1
      %s109 = scalar_select %p106, %s107, %s108
      %p112 = pneg %p106
      %p113 = scmp.eq.s32.totalorder %s13, 1
      %p114 = por %p112, %p113
      %p115 = scmp.ne.s32.totalorder %s107, %s110
      %p116 = scmp.eq.s32.totalorder %s13, 0
      %p117 = por %p115, %p116
      %p118 = scmp.ne.s32.totalorder %s107, %s110
      %p119 = scmp.eq.s32.totalorder %s18, 1
      %p120 = por %p118, %p119
      %p121 = scmp.ne.s32.totalorder %s110, %s111
      %p122 = scmp.eq.s32.totalorder %s18, 0
      %p123 = por %p121, %p122
      %p124 = scmp.ne.s32.totalorder %s110, %s111
      %p125 = scmp.eq.s32.totalorder %s19, 1
      %p126 = por %p124, %p125
      %p128 = scmp.ne.s32.totalorder %s111, %s127
      %p129 = scmp.eq.s32.totalorder %s19, 0
      %p130 = por %p128, %p129
      %s131 = ssub.s32 %s20, %s32
      %p132 = scmp.eq.s32.totalorder %s131, 0
      %s134 = sadd.s32 %s133, 1
      %s135 = scalar_select %p132, %s133, %s134
      %p138 = pneg %p132
      %p139 = scmp.eq.s32.totalorder %s13, 1
      %p140 = por %p138, %p139
      %p141 = scmp.ne.s32.totalorder %s133, %s136
      %p142 = scmp.eq.s32.totalorder %s13, 0
      %p143 = por %p141, %p142
      %p144 = scmp.ne.s32.totalorder %s133, %s136
      %p145 = scmp.eq.s32.totalorder %s18, 1
      %p146 = por %p144, %p145
      %p147 = scmp.ne.s32.totalorder %s136, %s137
      %p148 = scmp.eq.s32.totalorder %s18, 0
      %p149 = por %p147, %p148
      %p150 = scmp.ne.s32.totalorder %s136, %s137
      %p151 = scmp.eq.s32.totalorder %s19, 1
      %p152 = por %p150, %p151
      %p154 = scmp.ne.s32.totalorder %s137, %s153
      %p155 = scmp.eq.s32.totalorder %s19, 0
      %p156 = por %p154, %p155
      %p157 = scmp.le.s32.totalorder 1, %s13
      %p158 = scmp.lt.s32.totalorder %s13, 3
      %p159 = pnand %p157, %p158
      %p160 = pneg %p159
      // Predicated region
      $region9: #{tpu_custom_call.1} parent=5 // pred_check
        _
      $region10: #{tpu_custom_call.1} parent=5 // pred_check_branch
        %162 = sbr.rel (%p159) target = $region12
      $region11: #{tpu_custom_call.1} parent=5 // pred_region
        %s163 = ssub.s32 %s13, 1
        // Predicated region
        $region13: #{tpu_custom_call.1} parent=11 // pred_check
          %p164 = pneg %p46
        $region14: #{tpu_custom_call.1} parent=11 // pred_check_branch
          %166 = sbr.rel (%p164) target = $region16
        $region15: #{tpu_custom_call.1} parent=11 // pred_region
          _
        $region16: #{tpu_custom_call.1} parent=11 // pred_fallthru
          _
        // Predicated region
        $region17: #{tpu_custom_call.1} parent=11 // pred_check
          %p167 = pneg %p67
        $region18: #{tpu_custom_call.1} parent=11 // pred_check_branch
          %169 = sbr.rel (%p167) target = $region20
        $region19: #{tpu_custom_call.1} parent=11 // pred_region
          _
        $region20: #{tpu_custom_call.1} parent=11 // pred_fallthru
          _
      $region12: #{tpu_custom_call.1} parent=5 // pred_fallthru
        _
      %p170 = scmp.lt.s32.totalorder %s13, 2
      // Predicated region
      $region21: #{tpu_custom_call.1} parent=5 // pred_check
        %p171 = pneg %p170
      $region22: #{tpu_custom_call.1} parent=5 // pred_check_branch
        %173 = sbr.rel (%p171) target = $region24
      $region23: #{tpu_custom_call.1} parent=5 // pred_region
        // Predicated region
        $region25: #{tpu_custom_call.1} parent=23 // pred_check
          %p174 = pneg %p89
        $region26: #{tpu_custom_call.1} parent=23 // pred_check_branch
          %176 = sbr.rel (%p174) target = $region28
        $region27: #{tpu_custom_call.1} parent=23 // pred_region
          %s177 = sand.u32 %s79, 1
          %s178 = scalar_lea.sflag [#allocation4], %s177
          %s179 = sand.u32 %s79, 1
          %s180 = smul.addr %s179, 256
          %s181 = scalar_lea.vmem [#allocation3], %s180
          %s182 = sadd.s32 %s20, %s21
          %s183 = smul.u32 8, %s182
          %s185 = ssub.s32 4096, 4096
          %186 = vsyncadd %s178, %s185
          %s187 = smul.addr %s183, 4
          %s188 = smul.addr %s187, 128
          %s189 = scalar_lea.hbm %s2, %s188
          %s190 = sshll.u32 %s181, 4
          %s191 = int_to_ptr.vmem [resolvable:$true] %s190
          %196 = dma.hbm_to_vmem [thread:$0]  %s189, 4096, %s191, %s178, 128, 128, 8
        $region28: #{tpu_custom_call.1} parent=23 // pred_fallthru
          _
        // Predicated region
        $region29: #{tpu_custom_call.1} parent=23 // pred_check
          %p197 = pneg %p117
        $region30: #{tpu_custom_call.1} parent=23 // pred_check_branch
          %199 = sbr.rel (%p197) target = $region32
        $region31: #{tpu_custom_call.1} parent=23 // pred_region
          %s200 = sadd.s32 %s20, %s21
          %s201 = smul.u32 8, %s200
          %p202 = scmp.lt.s32.totalorder %s201, 15
          %s203 = scalar_select %p202, %s201, 15
          %s204 = smul.addr %s203, 8
          %s205 = scalar_lea.vmem %s3, %s204
          %s206 = sadd.s32 %s20, %s21
          %s207 = smul.u32 8, %s206
        $region32: #{tpu_custom_call.1} parent=23 // pred_fallthru
          _
      $region24: #{tpu_custom_call.1} parent=5 // pred_fallthru
        _
      %p208 = scmp.le.s32.totalorder 1, %s13
      %p209 = scmp.lt.s32.totalorder %s13, 3
      %p210 = pnand %p208, %p209
      %p211 = pneg %p210
      // Predicated region
      $region33: #{tpu_custom_call.1} parent=5 // pred_check
        _
      $region34: #{tpu_custom_call.1} parent=5 // pred_check_branch
        %213 = sbr.rel (%p210) target = $region36
      $region35: #{tpu_custom_call.1} parent=5 // pred_region
        %s214 = ssub.s32 %s13, 1
        %s215 = sand.u32 %s82, 1
        %s216 = scalar_lea.sflag [#allocation4], %s215
        %s217 = sand.u32 %s82, 1
        %s218 = smul.addr %s217, 256
        %s219 = scalar_lea.vmem [#allocation3], %s218
        // Predicated region
        $region37: #{tpu_custom_call.1} parent=35 // pred_check
          %p220 = pneg %p95
        $region38: #{tpu_custom_call.1} parent=35 // pred_check_branch
          %222 = sbr.rel (%p220) target = $region40
        $region39: #{tpu_custom_call.1} parent=35 // pred_region
          %223 = dma.done %s216, 4096
        $region40: #{tpu_custom_call.1} parent=35 // pred_fallthru
          _
        %p224 = pneg %p46
        %p225 = pneg %p43
        %p226 = pneg %p67
        %p227 = pneg %p64
        %s228 = sand.u32 %s82, 1
        %s229 = scalar_lea.sflag [#allocation4], %s228
        %s230 = sand.u32 %s82, 1
        %s231 = smul.addr %s230, 256
        %s232 = scalar_lea.vmem [#allocation3], %s231
        %p233 = pneg %p95
        %p234 = pneg %p92
        %s235 = sadd.s32 %s22, %s23
        %s236 = smul.u32 8, %s235
        %p237 = scmp.lt.s32.totalorder %s236, 15
        %s238 = scalar_select %p237, %s236, 15
        %s239 = smul.addr %s238, 8
        %s240 = scalar_lea.vmem %s3, %s239
        %p241 = pneg %p123
        %p242 = pneg %p120
        %p243 = pneg %p149
        %p244 = pneg %p146
        %p245 = scmp.lt.s32.totalorder %s22, 1
        %s246 = scalar_select %p245, %s22, 1
        %s247 = scalar_lea.vmem %s4, %s246
        %s248 = sadd.s32 %s22, %s23
        %s249 = smul.u32 8, %s248
        %s250 = sadd.s32 %s22, %s23
        %s251 = smul.u32 8, %s250
        %p252 = scmp.lt.s32.totalorder %s251, 15
        %s253 = scalar_select %p252, %s251, 15
        %s254 = smul.addr %s253, 8
        %s255 = scalar_lea.vmem %s3, %s254
        %s256 = sadd.s32 %s22, %s23
        %s257 = smul.u32 8, %s256
        %p258 = scmp.lt.s32.totalorder %s22, 1
        %s259 = scalar_select %p258, %s22, 1
        %s260 = scalar_lea.vmem %s4, %s259
        %p261 = scmp.eq.s32.totalorder %s23, 0
        // Predicated region
        $region41: #{tpu_custom_call.1} parent=35 // pred_check
          %p262 = pneg %p261
        $region42: #{tpu_custom_call.1} parent=35 // pred_check_branch
          %264 = sbr.rel (%p262) target = $region44
        $region43: #{tpu_custom_call.1} parent=35 // pred_region
          %vm265 = vcmask 64512
          %266 = vst.msk [vmem:[#allocation2] sm:$0xff] %vm265, 0.0
          %267 = vst.msk [vmem:[#allocation2 + $0x8] sm:$0xff] %vm265, 0.0
          %268 = vst.msk [vmem:[#allocation2 + $0x10] sm:$0xff] %vm265, 0.0
          %269 = vst.msk [vmem:[#allocation2 + $0x18] sm:$0xff] %vm265, 0.0
          %270 = vst.msk [vmem:[#allocation2 + $0x20] sm:$0xff] %vm265, 0.0
          %271 = vst.msk [vmem:[#allocation2 + $0x28] sm:$0xff] %vm265, 0.0
          %272 = vst.msk [vmem:[#allocation2 + $0x30] sm:$0xff] %vm265, 0.0
          %273 = vst.msk [vmem:[#allocation2 + $0x38] sm:$0xff] %vm265, 0.0
        $region44: #{tpu_custom_call.1} parent=35 // pred_fallthru
          _
        %v274 = vld [vmem:[%s219] sm:$0xff]
        %v275 = vld [vmem:[%s219 + $0x8] sm:$0xff]
        %v276 = vld [vmem:[%s219 + $0x10] sm:$0xff]
        %v277 = vld [vmem:[%s219 + $0x18] sm:$0xff]
        %v278 = vld [vmem:[%s219 + $0x20] sm:$0xff]
        %v279 = vld [vmem:[%s219 + $0x28] sm:$0xff]
        %v280 = vld [vmem:[%s219 + $0x30] sm:$0xff]
        %v281 = vld [vmem:[%s219 + $0x38] sm:$0xff]
        %v282 = vld [vmem:[%s219 + $0x40] sm:$0xff]
        %v283 = vld [vmem:[%s219 + $0x48] sm:$0xff]
        %v284 = vld [vmem:[%s219 + $0x50] sm:$0xff]
        %v285 = vld [vmem:[%s219 + $0x58] sm:$0xff]
        %v286 = vld [vmem:[%s219 + $0x60] sm:$0xff]
        %v287 = vld [vmem:[%s219 + $0x68] sm:$0xff]
        %v288 = vld [vmem:[%s219 + $0x70] sm:$0xff]
        %v289 = vld [vmem:[%s219 + $0x78] sm:$0xff]
        %v290 = vld [vmem:[%s219 + $0x80] sm:$0xff]
        %v291 = vld [vmem:[%s219 + $0x88] sm:$0xff]
        %v292 = vld [vmem:[%s219 + $0x90] sm:$0xff]
        %v293 = vld [vmem:[%s219 + $0x98] sm:$0xff]
        %v294 = vld [vmem:[%s219 + $0xa0] sm:$0xff]
        %v295 = vld [vmem:[%s219 + $0xa8] sm:$0xff]
        %v296 = vld [vmem:[%s219 + $0xb0] sm:$0xff]
        %v297 = vld [vmem:[%s219 + $0xb8] sm:$0xff]
        %v298 = vld [vmem:[%s219 + $0xc0] sm:$0xff]
        %v299 = vld [vmem:[%s219 + $0xc8] sm:$0xff]
        %v300 = vld [vmem:[%s219 + $0xd0] sm:$0xff]
        %v301 = vld [vmem:[%s219 + $0xd8] sm:$0xff]
        %v302 = vld [vmem:[%s219 + $0xe0] sm:$0xff]
        %v303 = vld [vmem:[%s219 + $0xe8] sm:$0xff]
        %v304 = vld [vmem:[%s219 + $0xf0] sm:$0xff]
        %v305 = vld [vmem:[%s219 + $0xf8] sm:$0xff]
        %v306 = vld [vmem:[%s0] sm:$0xff]
        %v307 = vld [vmem:[%s0 + $0x8] sm:$0xff]
        %v308 = vld [vmem:[%s0 + $0x10] sm:$0xff]
        %v309 = vld [vmem:[%s0 + $0x18] sm:$0xff]
        %vm310 = vcmask 261120
        %v312 = vsel %vm310, %v274, 0
        %v315 = vsel %vm310, %v275, 0
        %v318 = vsel %vm310, %v276, 0
        %v321 = vsel %vm310, %v277, 0
        %v324 = vsel %vm310, %v278, 0
        %v327 = vsel %vm310, %v279, 0
        %v330 = vsel %vm310, %v280, 0
        %v333 = vsel %vm310, %v281, 0
        %v336 = vsel %vm310, %v282, 0
        %v339 = vsel %vm310, %v283, 0
        %v342 = vsel %vm310, %v284, 0
        %v345 = vsel %vm310, %v285, 0
        %v348 = vsel %vm310, %v286, 0
        %v351 = vsel %vm310, %v287, 0
        %v354 = vsel %vm310, %v288, 0
        %v357 = vsel %vm310, %v289, 0
        %v360 = vsel %vm310, %v290, 0
        %v363 = vsel %vm310, %v291, 0
        %v366 = vsel %vm310, %v292, 0
        %v369 = vsel %vm310, %v293, 0
        %v372 = vsel %vm310, %v294, 0
        %v375 = vsel %vm310, %v295, 0
        %v378 = vsel %vm310, %v296, 0
        %v381 = vsel %vm310, %v297, 0
        %v384 = vsel %vm310, %v298, 0
        %v387 = vsel %vm310, %v299, 0
        %v390 = vsel %vm310, %v300, 0
        %v393 = vsel %vm310, %v301, 0
        %v396 = vsel %vm310, %v302, 0
        %v399 = vsel %vm310, %v303, 0
        %v402 = vsel %vm310, %v304, 0
        %v405 = vsel %vm310, %v305, 0
        %407 = vmatprep.subr.mxu0 0.0
        %408 = vmatpush1.msra.mxu0 0.0
        %409 = vmatprep.subr.mxu0 0.0
        %410 = vmatpush1.msra.mxu0 0.0
        %411 = vmatprep.subr.mxu0 0.0
        %412 = vmatpush1.msra.mxu0 0.0
        %413 = vmatprep.subr.mxu0 0.0
        %414 = vmatpush1.msra.mxu0 0.0
        %415 = vmatprep.subr.mxu0 0.0
        %416 = vmatpush1.msra.mxu0 0.0
        %417 = vmatprep.subr.mxu0 0.0
        %418 = vmatpush1.msra.mxu0 0.0
        %419 = vmatprep.subr.mxu0 0.0
        %420 = vmatpush1.msra.mxu0 0.0
        %421 = vmatprep.subr.mxu0 0.0
        %422 = vmatpush1.msra.mxu0 0.0
        %423 = vmatprep.subr.mxu0 0.0
        %424 = vmatpush1.msra.mxu0 0.0
        %425 = vmatprep.subr.mxu0 0.0
        %426 = vmatpush1.msra.mxu0 0.0
        %427 = vmatprep.subr.mxu0 0.0
        %428 = vmatpush1.msra.mxu0 0.0
        %429 = vmatprep.subr.mxu0 0.0
        %430 = vmatpush1.msra.mxu0 0.0
        %431 = vmatprep.subr.mxu0 0.0
        %432 = vmatpush1.msra.mxu0 %v309
        %433 = vmatprep.subr.mxu0 0.0
        %434 = vmatpush1.msra.mxu0 %v308
        %435 = vmatprep.subr.mxu0 0.0
        %436 = vmatpush1.msra.mxu0 %v307
        %437 = vmatprep.subr.mxu0 0.0
        %438 = vmatpush1.msra.mxu0 %v306
        %439 = vmatprep.subr.mxu0 0.0
        %440 = vmatpush2.msra.mxu0 0.0
        %441 = vmatprep.subr.mxu0 0.0
        %442 = vmatpush2.msra.mxu0 0.0
        %443 = vmatprep.subr.mxu0 0.0
        %444 = vmatpush2.msra.mxu0 0.0
        %445 = vmatprep.subr.mxu0 0.0
        %446 = vmatpush2.msra.mxu0 0.0
        %447 = vmatprep.subr.mxu0 0.0
        %448 = vmatpush2.msra.mxu0 0.0
        %449 = vmatprep.subr.mxu0 0.0
        %450 = vmatpush2.msra.mxu0 0.0
        %451 = vmatprep.subr.mxu0 0.0
        %452 = vmatpush2.msra.mxu0 0.0
        %453 = vmatprep.subr.mxu0 0.0
        %454 = vmatpush2.msra.mxu0 0.0
        %455 = vmatprep.subr.mxu0 0.0
        %456 = vmatpush2.msra.mxu0 0.0
        %457 = vmatprep.subr.mxu0 0.0
        %458 = vmatpush2.msra.mxu0 0.0
        %459 = vmatprep.subr.mxu0 0.0
        %460 = vmatpush2.msra.mxu0 0.0
        %461 = vmatprep.subr.mxu0 0.0
        %462 = vmatpush2.msra.mxu0 0.0
        %463 = vmatprep.subr.mxu0 0.0
        %464 = vmatpush2.msra.mxu0 0.0
        %465 = vmatprep.subr.mxu0 0.0
        %466 = vmatpush2.msra.mxu0 0.0
        %467 = vmatprep.subr.mxu0 0.0
        %468 = vmatpush2.msra.mxu0 0.0
        %469 = vmatprep.subr.mxu0 0.0
        %470 = vmatpush2.msra.mxu0 0.0
        %471 = vmatprep.mubr.f32.mxu0 0.0
        %472 = vmatmul.mubr.f32.gmra.mxu0 %v312
        %v473 = vpop.f32.mrf.mxu0
        %v474 = vadd.f32 0.0, %v473
        %v475 = vpop.f32.mrf.mxu0
        %476 = vmatprep.mubr.f32.mxu0 0.0
        %477 = vmatmul.mubr.f32.gmra.mxu0 %v315
        %v478 = vpop.f32.mrf.mxu0
        %v479 = vadd.f32 0.0, %v478
        %v480 = vpop.f32.mrf.mxu0
        %481 = vmatprep.mubr.f32.mxu0 0.0
        %482 = vmatmul.mubr.f32.gmra.mxu0 %v318
        %v483 = vpop.f32.mrf.mxu0
        %v484 = vadd.f32 0.0, %v483
        %v485 = vpop.f32.mrf.mxu0
        %486 = vmatprep.mubr.f32.mxu0 0.0
        %487 = vmatmul.mubr.f32.gmra.mxu0 %v321
        %v488 = vpop.f32.mrf.mxu0
        %v489 = vadd.f32 0.0, %v488
        %v490 = vpop.f32.mrf.mxu0
        %491 = vmatprep.mubr.f32.mxu0 0.0
        %492 = vmatmul.mubr.f32.gmra.mxu0 %v324
        %v493 = vpop.f32.mrf.mxu0
        %v494 = vadd.f32 0.0, %v493
        %v495 = vpop.f32.mrf.mxu0
        %496 = vmatprep.mubr.f32.mxu0 0.0
        %497 = vmatmul.mubr.f32.gmra.mxu0 %v327
        %v498 = vpop.f32.mrf.mxu0
        %v499 = vadd.f32 0.0, %v498
        %v500 = vpop.f32.mrf.mxu0
        %501 = vmatprep.mubr.f32.mxu0 0.0
        %502 = vmatmul.mubr.f32.gmra.mxu0 %v330
        %v503 = vpop.f32.mrf.mxu0
        %v504 = vadd.f32 0.0, %v503
        %v505 = vpop.f32.mrf.mxu0
        %506 = vmatprep.mubr.f32.mxu0 0.0
        %507 = vmatmul.mubr.f32.gmra.mxu0 %v333
        %v508 = vpop.f32.mrf.mxu0
        %v509 = vadd.f32 0.0, %v508
        %v510 = vpop.f32.mrf.mxu0
        %511 = vmatprep.mubr.f32.mxu0 0.0
        %512 = vmatmul.mubr.f32.gmra.mxu0 %v336
        %v513 = vpop.f32.mrf.mxu0
        %v514 = vadd.f32 0.0, %v513
        %v515 = vpop.f32.mrf.mxu0
        %516 = vmatprep.mubr.f32.mxu0 0.0
        %517 = vmatmul.mubr.f32.gmra.mxu0 %v339
        %v518 = vpop.f32.mrf.mxu0
        %v519 = vadd.f32 0.0, %v518
        %v520 = vpop.f32.mrf.mxu0
        %521 = vmatprep.mubr.f32.mxu0 0.0
        %522 = vmatmul.mubr.f32.gmra.mxu0 %v342
        %v523 = vpop.f32.mrf.mxu0
        %v524 = vadd.f32 0.0, %v523
        %v525 = vpop.f32.mrf.mxu0
        %526 = vmatprep.mubr.f32.mxu0 0.0
        %527 = vmatmul.mubr.f32.gmra.mxu0 %v345
        %v528 = vpop.f32.mrf.mxu0
        %v529 = vadd.f32 0.0, %v528
        %v530 = vpop.f32.mrf.mxu0
        %531 = vmatprep.mubr.f32.mxu0 0.0
        %532 = vmatmul.mubr.f32.gmra.mxu0 %v348
        %v533 = vpop.f32.mrf.mxu0
        %v534 = vadd.f32 0.0, %v533
        %v535 = vpop.f32.mrf.mxu0
        %536 = vmatprep.mubr.f32.mxu0 0.0
        %537 = vmatmul.mubr.f32.gmra.mxu0 %v351
        %v538 = vpop.f32.mrf.mxu0
        %v539 = vadd.f32 0.0, %v538
        %v540 = vpop.f32.mrf.mxu0
        %541 = vmatprep.mubr.f32.mxu0 0.0
        %542 = vmatmul.mubr.f32.gmra.mxu0 %v354
        %v543 = vpop.f32.mrf.mxu0
        %v544 = vadd.f32 0.0, %v543
        %v545 = vpop.f32.mrf.mxu0
        %546 = vmatprep.mubr.f32.mxu0 0.0
        %547 = vmatmul.mubr.f32.gmra.mxu0 %v357
        %v548 = vpop.f32.mrf.mxu0
        %v549 = vadd.f32 0.0, %v548
        %v550 = vpop.f32.mrf.mxu0
        %551 = vmatprep.mubr.f32.mxu0 0.0
        %552 = vmatmul.mubr.f32.gmra.mxu0 %v360
        %v553 = vpop.f32.mrf.mxu0
        %v554 = vadd.f32 0.0, %v553
        %v555 = vpop.f32.mrf.mxu0
        %556 = vmatprep.mubr.f32.mxu0 0.0
        %557 = vmatmul.mubr.f32.gmra.mxu0 %v363
        %v558 = vpop.f32.mrf.mxu0
        %v559 = vadd.f32 0.0, %v558
        %v560 = vpop.f32.mrf.mxu0
        %561 = vmatprep.mubr.f32.mxu0 0.0
        %562 = vmatmul.mubr.f32.gmra.mxu0 %v366
        %v563 = vpop.f32.mrf.mxu0
        %v564 = vadd.f32 0.0, %v563
        %v565 = vpop.f32.mrf.mxu0
        %566 = vmatprep.mubr.f32.mxu0 0.0
        %567 = vmatmul.mubr.f32.gmra.mxu0 %v369
        %v568 = vpop.f32.mrf.mxu0
        %v569 = vadd.f32 0.0, %v568
        %v570 = vpop.f32.mrf.mxu0
        %571 = vmatprep.mubr.f32.mxu0 0.0
        %572 = vmatmul.mubr.f32.gmra.mxu0 %v372
        %v573 = vpop.f32.mrf.mxu0
        %v574 = vadd.f32 0.0, %v573
        %v575 = vpop.f32.mrf.mxu0
        %576 = vmatprep.mubr.f32.mxu0 0.0
        %577 = vmatmul.mubr.f32.gmra.mxu0 %v375
        %v578 = vpop.f32.mrf.mxu0
        %v579 = vadd.f32 0.0, %v578
        %v580 = vpop.f32.mrf.mxu0
        %581 = vmatprep.mubr.f32.mxu0 0.0
        %582 = vmatmul.mubr.f32.gmra.mxu0 %v378
        %v583 = vpop.f32.mrf.mxu0
        %v584 = vadd.f32 0.0, %v583
        %v585 = vpop.f32.mrf.mxu0
        %586 = vmatprep.mubr.f32.mxu0 0.0
        %587 = vmatmul.mubr.f32.gmra.mxu0 %v381
        %v588 = vpop.f32.mrf.mxu0
        %v589 = vadd.f32 0.0, %v588
        %v590 = vpop.f32.mrf.mxu0
        %591 = vmatprep.mubr.f32.mxu0 0.0
        %592 = vmatmul.mubr.f32.gmra.mxu0 %v384
        %v593 = vpop.f32.mrf.mxu0
        %v594 = vadd.f32 0.0, %v593
        %v595 = vpop.f32.mrf.mxu0
        %596 = vmatprep.mubr.f32.mxu0 0.0
        %597 = vmatmul.mubr.f32.gmra.mxu0 %v387
        %v598 = vpop.f32.mrf.mxu0
        %v599 = vadd.f32 0.0, %v598
        %v600 = vpop.f32.mrf.mxu0
        %601 = vmatprep.mubr.f32.mxu0 0.0
        %602 = vmatmul.mubr.f32.gmra.mxu0 %v390
        %v603 = vpop.f32.mrf.mxu0
        %v604 = vadd.f32 0.0, %v603
        %v605 = vpop.f32.mrf.mxu0
        %606 = vmatprep.mubr.f32.mxu0 0.0
        %607 = vmatmul.mubr.f32.gmra.mxu0 %v393
        %v608 = vpop.f32.mrf.mxu0
        %v609 = vadd.f32 0.0, %v608
        %v610 = vpop.f32.mrf.mxu0
        %611 = vmatprep.mubr.f32.mxu0 0.0
        %612 = vmatmul.mubr.f32.gmra.mxu0 %v396
        %v613 = vpop.f32.mrf.mxu0
        %v614 = vadd.f32 0.0, %v613
        %v615 = vpop.f32.mrf.mxu0
        %616 = vmatprep.mubr.f32.mxu0 0.0
        %617 = vmatmul.mubr.f32.gmra.mxu0 %v399
        %v618 = vpop.f32.mrf.mxu0
        %v619 = vadd.f32 0.0, %v618
        %v620 = vpop.f32.mrf.mxu0
        %621 = vmatprep.mubr.f32.mxu0 0.0
        %622 = vmatmul.mubr.f32.gmra.mxu0 %v402
        %v623 = vpop.f32.mrf.mxu0
        %v624 = vadd.f32 0.0, %v623
        %v625 = vpop.f32.mrf.mxu0
        %626 = vmatprep.mubr.f32.mxu0 0.0
        %627 = vmatmul.mubr.f32.gmra.mxu0 %v405
        %v628 = vpop.f32.mrf.mxu0
        %v629 = vadd.f32 0.0, %v628
        %v630 = vpop.f32.mrf.mxu0
        %631 = vdwg.mxu0
        %632 = vxpose.xlu0.b32.start [1/16] %v474, 128
        %633 = vxpose.xlu0.b32.cont [2/16] %v479, 128
        %634 = vxpose.xlu0.b32.cont [3/16] %v484, 128
        %635 = vxpose.xlu0.b32.cont [4/16] %v489, 128
        %636 = vxpose.xlu0.b32.cont [5/16] 0.0, 128
        %637 = vxpose.xlu0.b32.cont [6/16] 0.0, 128
        %638 = vxpose.xlu0.b32.cont [7/16] 0.0, 128
        %639 = vxpose.xlu0.b32.cont [8/16] 0.0, 128
        %640 = vxpose.xlu0.b32.cont [9/16] 0.0, 128
        %641 = vxpose.xlu0.b32.cont [10/16] 0.0, 128
        %642 = vxpose.xlu0.b32.cont [11/16] 0.0, 128
        %643 = vxpose.xlu0.b32.cont [12/16] 0.0, 128
        %644 = vxpose.xlu0.b32.cont [13/16] 0.0, 128
        %645 = vxpose.xlu0.b32.cont [14/16] 0.0, 128
        %646 = vxpose.xlu0.b32.cont [15/16] 0.0, 128
        %647 = vxpose.xlu0.b32.end [16/16] 0.0, 128
        %v648 = vpop.trf.xlu0
        %v649 = vpop.trf.xlu0
        %v650 = vpop.trf.xlu0
        %v651 = vpop.trf.xlu0
        %v652 = vpop.trf.xlu0
        %v653 = vpop.trf.xlu0
        %v654 = vpop.trf.xlu0
        %v655 = vpop.trf.xlu0
        %v656 = vpop.trf.xlu0
        %v657 = vpop.trf.xlu0
        %v658 = vpop.trf.xlu0
        %v659 = vpop.trf.xlu0
        %v660 = vpop.trf.xlu0
        %v661 = vpop.trf.xlu0
        %v662 = vpop.trf.xlu0
        %v663 = vpop.trf.xlu0
        %664 = vxpose.xlu0.b32.start [1/16] %v494, 128
        %665 = vxpose.xlu0.b32.cont [2/16] %v499, 128
        %666 = vxpose.xlu0.b32.cont [3/16] %v504, 128
        %667 = vxpose.xlu0.b32.cont [4/16] %v509, 128
        %668 = vxpose.xlu0.b32.cont [5/16] 0.0, 128
        %669 = vxpose.xlu0.b32.cont [6/16] 0.0, 128
        %670 = vxpose.xlu0.b32.cont [7/16] 0.0, 128
        %671 = vxpose.xlu0.b32.cont [8/16] 0.0, 128
        %672 = vxpose.xlu0.b32.cont [9/16] 0.0, 128
        %673 = vxpose.xlu0.b32.cont [10/16] 0.0, 128
        %674 = vxpose.xlu0.b32.cont [11/16] 0.0, 128
        %675 = vxpose.xlu0.b32.cont [12/16] 0.0, 128
        %676 = vxpose.xlu0.b32.cont [13/16] 0.0, 128
        %677 = vxpose.xlu0.b32.cont [14/16] 0.0, 128
        %678 = vxpose.xlu0.b32.cont [15/16] 0.0, 128
        %679 = vxpose.xlu0.b32.end [16/16] 0.0, 128
        %v680 = vpop.trf.xlu0
        %v681 = vpop.trf.xlu0
        %v682 = vpop.trf.xlu0
        %v683 = vpop.trf.xlu0
        %v684 = vpop.trf.xlu0
        %v685 = vpop.trf.xlu0
        %v686 = vpop.trf.xlu0
        %v687 = vpop.trf.xlu0
        %v688 = vpop.trf.xlu0
        %v689 = vpop.trf.xlu0
        %v690 = vpop.trf.xlu0
        %v691 = vpop.trf.xlu0
        %v692 = vpop.trf.xlu0
        %v693 = vpop.trf.xlu0
        %v694 = vpop.trf.xlu0
        %v695 = vpop.trf.xlu0
        %696 = vxpose.xlu0.b32.start [1/16] %v514, 128
        %697 = vxpose.xlu0.b32.cont [2/16] %v519, 128
        %698 = vxpose.xlu0.b32.cont [3/16] %v524, 128
        %699 = vxpose.xlu0.b32.cont [4/16] %v529, 128
        %700 = vxpose.xlu0.b32.cont [5/16] 0.0, 128
        %701 = vxpose.xlu0.b32.cont [6/16] 0.0, 128
        %702 = vxpose.xlu0.b32.cont [7/16] 0.0, 128
        %703 = vxpose.xlu0.b32.cont [8/16] 0.0, 128
        %704 = vxpose.xlu0.b32.cont [9/16] 0.0, 128
        %705 = vxpose.xlu0.b32.cont [10/16] 0.0, 128
        %706 = vxpose.xlu0.b32.cont [11/16] 0.0, 128
        %707 = vxpose.xlu0.b32.cont [12/16] 0.0, 128
        %708 = vxpose.xlu0.b32.cont [13/16] 0.0, 128
        %709 = vxpose.xlu0.b32.cont [14/16] 0.0, 128
        %710 = vxpose.xlu0.b32.cont [15/16] 0.0, 128
        %711 = vxpose.xlu0.b32.end [16/16] 0.0, 128
        %v712 = vpop.trf.xlu0
        %v713 = vpop.trf.xlu0
        %v714 = vpop.trf.xlu0
        %v715 = vpop.trf.xlu0
        %v716 = vpop.trf.xlu0
        %v717 = vpop.trf.xlu0
        %v718 = vpop.trf.xlu0
        %v719 = vpop.trf.xlu0
        %v720 = vpop.trf.xlu0
        %v721 = vpop.trf.xlu0
        %v722 = vpop.trf.xlu0
        %v723 = vpop.trf.xlu0
        %v724 = vpop.trf.xlu0
        %v725 = vpop.trf.xlu0
        %v726 = vpop.trf.xlu0
        %v727 = vpop.trf.xlu0
        %728 = vxpose.xlu0.b32.start [1/16] %v534, 128
        %729 = vxpose.xlu0.b32.cont [2/16] %v539, 128
        %730 = vxpose.xlu0.b32.cont [3/16] %v544, 128
        %731 = vxpose.xlu0.b32.cont [4/16] %v549, 128
        %732 = vxpose.xlu0.b32.cont [5/16] 0.0, 128
        %733 = vxpose.xlu0.b32.cont [6/16] 0.0, 128
        %734 = vxpose.xlu0.b32.cont [7/16] 0.0, 128
        %735 = vxpose.xlu0.b32.cont [8/16] 0.0, 128
        %736 = vxpose.xlu0.b32.cont [9/16] 0.0, 128
        %737 = vxpose.xlu0.b32.cont [10/16] 0.0, 128
        %738 = vxpose.xlu0.b32.cont [11/16] 0.0, 128
        %739 = vxpose.xlu0.b32.cont [12/16] 0.0, 128
        %740 = vxpose.xlu0.b32.cont [13/16] 0.0, 128
        %741 = vxpose.xlu0.b32.cont [14/16] 0.0, 128
        %742 = vxpose.xlu0.b32.cont [15/16] 0.0, 128
        %743 = vxpose.xlu0.b32.end [16/16] 0.0, 128
        %v744 = vpop.trf.xlu0
        %v745 = vpop.trf.xlu0
        %v746 = vpop.trf.xlu0
        %v747 = vpop.trf.xlu0
        %v748 = vpop.trf.xlu0
        %v749 = vpop.trf.xlu0
        %v750 = vpop.trf.xlu0
        %v751 = vpop.trf.xlu0
        %v752 = vpop.trf.xlu0
        %v753 = vpop.trf.xlu0
        %v754 = vpop.trf.xlu0
        %v755 = vpop.trf.xlu0
        %v756 = vpop.trf.xlu0
        %v757 = vpop.trf.xlu0
        %v758 = vpop.trf.xlu0
        %v759 = vpop.trf.xlu0
        %760 = vxpose.xlu0.b32.start [1/16] %v554, 128
        %761 = vxpose.xlu0.b32.cont [2/16] %v559, 128
        %762 = vxpose.xlu0.b32.cont [3/16] %v564, 128
        %763 = vxpose.xlu0.b32.cont [4/16] %v569, 128
        %764 = vxpose.xlu0.b32.cont [5/16] 0.0, 128
        %765 = vxpose.xlu0.b32.cont [6/16] 0.0, 128
        %766 = vxpose.xlu0.b32.cont [7/16] 0.0, 128
        %767 = vxpose.xlu0.b32.cont [8/16] 0.0, 128
        %768 = vxpose.xlu0.b32.cont [9/16] 0.0, 128
        %769 = vxpose.xlu0.b32.cont [10/16] 0.0, 128
        %770 = vxpose.xlu0.b32.cont [11/16] 0.0, 128
        %771 = vxpose.xlu0.b32.cont [12/16] 0.0, 128
        %772 = vxpose.xlu0.b32.cont [13/16] 0.0, 128
        %773 = vxpose.xlu0.b32.cont [14/16] 0.0, 128
        %774 = vxpose.xlu0.b32.cont [15/16] 0.0, 128
        %775 = vxpose.xlu0.b32.end [16/16] 0.0, 128
        %v776 = vpop.trf.xlu0
        %v777 = vpop.trf.xlu0
        %v778 = vpop.trf.xlu0
        %v779 = vpop.trf.xlu0
        %v780 = vpop.trf.xlu0
        %v781 = vpop.trf.xlu0
        %v782 = vpop.trf.xlu0
        %v783 = vpop.trf.xlu0
        %v784 = vpop.trf.xlu0
        %v785 = vpop.trf.xlu0
        %v786 = vpop.trf.xlu0
        %v787 = vpop.trf.xlu0
        %v788 = vpop.trf.xlu0
        %v789 = vpop.trf.xlu0
        %v790 = vpop.trf.xlu0
        %v791 = vpop.trf.xlu0
        %792 = vxpose.xlu0.b32.start [1/16] %v574, 128
        %793 = vxpose.xlu0.b32.cont [2/16] %v579, 128
        %794 = vxpose.xlu0.b32.cont [3/16] %v584, 128
        %795 = vxpose.xlu0.b32.cont [4/16] %v589, 128
        %796 = vxpose.xlu0.b32.cont [5/16] 0.0, 128
        %797 = vxpose.xlu0.b32.cont [6/16] 0.0, 128
        %798 = vxpose.xlu0.b32.cont [7/16] 0.0, 128
        %799 = vxpose.xlu0.b32.cont [8/16] 0.0, 128
        %800 = vxpose.xlu0.b32.cont [9/16] 0.0, 128
        %801 = vxpose.xlu0.b32.cont [10/16] 0.0, 128
        %802 = vxpose.xlu0.b32.cont [11/16] 0.0, 128
        %803 = vxpose.xlu0.b32.cont [12/16] 0.0, 128
        %804 = vxpose.xlu0.b32.cont [13/16] 0.0, 128
        %805 = vxpose.xlu0.b32.cont [14/16] 0.0, 128
        %806 = vxpose.xlu0.b32.cont [15/16] 0.0, 128
        %807 = vxpose.xlu0.b32.end [16/16] 0.0, 128
        %v808 = vpop.trf.xlu0
        %v809 = vpop.trf.xlu0
        %v810 = vpop.trf.xlu0
        %v811 = vpop.trf.xlu0
        %v812 = vpop.trf.xlu0
        %v813 = vpop.trf.xlu0
        %v814 = vpop.trf.xlu0
        %v815 = vpop.trf.xlu0
        %v816 = vpop.trf.xlu0
        %v817 = vpop.trf.xlu0
        %v818 = vpop.trf.xlu0
        %v819 = vpop.trf.xlu0
        %v820 = vpop.trf.xlu0
        %v821 = vpop.trf.xlu0
        %v822 = vpop.trf.xlu0
        %v823 = vpop.trf.xlu0
        %824 = vxpose.xlu0.b32.start [1/16] %v594, 128
        %825 = vxpose.xlu0.b32.cont [2/16] %v599, 128
        %826 = vxpose.xlu0.b32.cont [3/16] %v604, 128
        %827 = vxpose.xlu0.b32.cont [4/16] %v609, 128
        %828 = vxpose.xlu0.b32.cont [5/16] 0.0, 128
        %829 = vxpose.xlu0.b32.cont [6/16] 0.0, 128
        %830 = vxpose.xlu0.b32.cont [7/16] 0.0, 128
        %831 = vxpose.xlu0.b32.cont [8/16] 0.0, 128
        %832 = vxpose.xlu0.b32.cont [9/16] 0.0, 128
        %833 = vxpose.xlu0.b32.cont [10/16] 0.0, 128
        %834 = vxpose.xlu0.b32.cont [11/16] 0.0, 128
        %835 = vxpose.xlu0.b32.cont [12/16] 0.0, 128
        %836 = vxpose.xlu0.b32.cont [13/16] 0.0, 128
        %837 = vxpose.xlu0.b32.cont [14/16] 0.0, 128
        %838 = vxpose.xlu0.b32.cont [15/16] 0.0, 128
        %839 = vxpose.xlu0.b32.end [16/16] 0.0, 128
        %v840 = vpop.trf.xlu0
        %v841 = vpop.trf.xlu0
        %v842 = vpop.trf.xlu0
        %v843 = vpop.trf.xlu0
        %v844 = vpop.trf.xlu0
        %v845 = vpop.trf.xlu0
        %v846 = vpop.trf.xlu0
        %v847 = vpop.trf.xlu0
        %v848 = vpop.trf.xlu0
        %v849 = vpop.trf.xlu0
        %v850 = vpop.trf.xlu0
        %v851 = vpop.trf.xlu0
        %v852 = vpop.trf.xlu0
        %v853 = vpop.trf.xlu0
        %v854 = vpop.trf.xlu0
        %v855 = vpop.trf.xlu0
        %856 = vxpose.xlu0.b32.start [1/16] %v614, 128
        %857 = vxpose.xlu0.b32.cont [2/16] %v619, 128
        %858 = vxpose.xlu0.b32.cont [3/16] %v624, 128
        %859 = vxpose.xlu0.b32.cont [4/16] %v629, 128
        %860 = vxpose.xlu0.b32.cont [5/16] 0.0, 128
        %861 = vxpose.xlu0.b32.cont [6/16] 0.0, 128
        %862 = vxpose.xlu0.b32.cont [7/16] 0.0, 128
        %863 = vxpose.xlu0.b32.cont [8/16] 0.0, 128
        %864 = vxpose.xlu0.b32.cont [9/16] 0.0, 128
        %865 = vxpose.xlu0.b32.cont [10/16] 0.0, 128
        %866 = vxpose.xlu0.b32.cont [11/16] 0.0, 128
        %867 = vxpose.xlu0.b32.cont [12/16] 0.0, 128
        %868 = vxpose.xlu0.b32.cont [13/16] 0.0, 128
        %869 = vxpose.xlu0.b32.cont [14/16] 0.0, 128
        %870 = vxpose.xlu0.b32.cont [15/16] 0.0, 128
        %871 = vxpose.xlu0.b32.end [16/16] 0.0, 128
        %v872 = vpop.trf.xlu0
        %v873 = vpop.trf.xlu0
        %v874 = vpop.trf.xlu0
        %v875 = vpop.trf.xlu0
        %v876 = vpop.trf.xlu0
        %v877 = vpop.trf.xlu0
        %v878 = vpop.trf.xlu0
        %v879 = vpop.trf.xlu0
        %v880 = vpop.trf.xlu0
        %v881 = vpop.trf.xlu0
        %v882 = vpop.trf.xlu0
        %v883 = vpop.trf.xlu0
        %v884 = vpop.trf.xlu0
        %v885 = vpop.trf.xlu0
        %v886 = vpop.trf.xlu0
        %v887 = vpop.trf.xlu0
        %v888 = vld [vmem:[%s1] sm:$0xff]
        %v889 = vld [vmem:[%s1 + $0x8] sm:$0xff]
        %v890 = vld [vmem:[%s1 + $0x10] sm:$0xff]
        %v891 = vld [vmem:[%s1 + $0x18] sm:$0xff]
        %v893 = vsel %vm310, %v648, 0
        %v896 = vsel %vm310, %v680, 0
        %v899 = vsel %vm310, %v712, 0
        %v902 = vsel %vm310, %v744, 0
        %v905 = vsel %vm310, %v776, 0
        %v908 = vsel %vm310, %v808, 0
        %v911 = vsel %vm310, %v840, 0
        %v914 = vsel %vm310, %v872, 0
        %916 = vmatprep.subr.mxu0 0.0
        %917 = vmatpush1.msra.mxu0 0.0
        %918 = vmatprep.subr.mxu0 0.0
        %919 = vmatpush1.msra.mxu0 0.0
        %920 = vmatprep.subr.mxu0 0.0
        %921 = vmatpush1.msra.mxu0 0.0
        %922 = vmatprep.subr.mxu0 0.0
        %923 = vmatpush1.msra.mxu0 0.0
        %924 = vmatprep.subr.mxu0 0.0
        %925 = vmatpush1.msra.mxu0 0.0
        %926 = vmatprep.subr.mxu0 0.0
        %927 = vmatpush1.msra.mxu0 0.0
        %928 = vmatprep.subr.mxu0 0.0
        %929 = vmatpush1.msra.mxu0 0.0
        %930 = vmatprep.subr.mxu0 0.0
        %931 = vmatpush1.msra.mxu0 0.0
        %932 = vmatprep.subr.mxu0 0.0
        %933 = vmatpush1.msra.mxu0 0.0
        %934 = vmatprep.subr.mxu0 0.0
        %935 = vmatpush1.msra.mxu0 0.0
        %936 = vmatprep.subr.mxu0 0.0
        %937 = vmatpush1.msra.mxu0 0.0
        %938 = vmatprep.subr.mxu0 0.0
        %939 = vmatpush1.msra.mxu0 0.0
        %940 = vmatprep.subr.mxu0 0.0
        %941 = vmatpush1.msra.mxu0 %v891
        %942 = vmatprep.subr.mxu0 0.0
        %943 = vmatpush1.msra.mxu0 %v890
        %944 = vmatprep.subr.mxu0 0.0
        %945 = vmatpush1.msra.mxu0 %v889
        %946 = vmatprep.subr.mxu0 0.0
        %947 = vmatpush1.msra.mxu0 %v888
        %948 = vmatprep.subr.mxu0 0.0
        %949 = vmatpush2.msra.mxu0 0.0
        %950 = vmatprep.subr.mxu0 0.0
        %951 = vmatpush2.msra.mxu0 0.0
        %952 = vmatprep.subr.mxu0 0.0
        %953 = vmatpush2.msra.mxu0 0.0
        %954 = vmatprep.subr.mxu0 0.0
        %955 = vmatpush2.msra.mxu0 0.0
        %956 = vmatprep.subr.mxu0 0.0
        %957 = vmatpush2.msra.mxu0 0.0
        %958 = vmatprep.subr.mxu0 0.0
        %959 = vmatpush2.msra.mxu0 0.0
        %960 = vmatprep.subr.mxu0 0.0
        %961 = vmatpush2.msra.mxu0 0.0
        %962 = vmatprep.subr.mxu0 0.0
        %963 = vmatpush2.msra.mxu0 0.0
        %964 = vmatprep.subr.mxu0 0.0
        %965 = vmatpush2.msra.mxu0 0.0
        %966 = vmatprep.subr.mxu0 0.0
        %967 = vmatpush2.msra.mxu0 0.0
        %968 = vmatprep.subr.mxu0 0.0
        %969 = vmatpush2.msra.mxu0 0.0
        %970 = vmatprep.subr.mxu0 0.0
        %971 = vmatpush2.msra.mxu0 0.0
        %972 = vmatprep.subr.mxu0 0.0
        %973 = vmatpush2.msra.mxu0 0.0
        %974 = vmatprep.subr.mxu0 0.0
        %975 = vmatpush2.msra.mxu0 0.0
        %976 = vmatprep.subr.mxu0 0.0
        %977 = vmatpush2.msra.mxu0 0.0
        %978 = vmatprep.subr.mxu0 0.0
        %979 = vmatpush2.msra.mxu0 0.0
        %980 = vmatprep.mubr.f32.mxu0 0.0
        %981 = vmatmul.mubr.f32.gmra.mxu0 %v893
        %v982 = vpop.f32.mrf.mxu0
        %v983 = vadd.f32 0.0, %v982
        %v984 = vpop.f32.mrf.mxu0
        %985 = vmatprep.mubr.f32.mxu0 0.0
        %986 = vmatmul.mubr.f32.gmra.mxu0 %v896
        %v987 = vpop.f32.mrf.mxu0
        %v988 = vadd.f32 0.0, %v987
        %v989 = vpop.f32.mrf.mxu0
        %990 = vmatprep.mubr.f32.mxu0 0.0
        %991 = vmatmul.mubr.f32.gmra.mxu0 %v899
        %v992 = vpop.f32.mrf.mxu0
        %v993 = vadd.f32 0.0, %v992
        %v994 = vpop.f32.mrf.mxu0
        %995 = vmatprep.mubr.f32.mxu0 0.0
        %996 = vmatmul.mubr.f32.gmra.mxu0 %v902
        %v997 = vpop.f32.mrf.mxu0
        %v998 = vadd.f32 0.0, %v997
        %v999 = vpop.f32.mrf.mxu0
        %1000 = vmatprep.mubr.f32.mxu0 0.0
        %1001 = vmatmul.mubr.f32.gmra.mxu0 %v905
        %v1002 = vpop.f32.mrf.mxu0
        %v1003 = vadd.f32 0.0, %v1002
        %v1004 = vpop.f32.mrf.mxu0
        %1005 = vmatprep.mubr.f32.mxu0 0.0
        %1006 = vmatmul.mubr.f32.gmra.mxu0 %v908
        %v1007 = vpop.f32.mrf.mxu0
        %v1008 = vadd.f32 0.0, %v1007
        %v1009 = vpop.f32.mrf.mxu0
        %1010 = vmatprep.mubr.f32.mxu0 0.0
        %1011 = vmatmul.mubr.f32.gmra.mxu0 %v911
        %v1012 = vpop.f32.mrf.mxu0
        %v1013 = vadd.f32 0.0, %v1012
        %v1014 = vpop.f32.mrf.mxu0
        %1015 = vmatprep.mubr.f32.mxu0 0.0
        %1016 = vmatmul.mubr.f32.gmra.mxu0 %v914
        %v1017 = vpop.f32.mrf.mxu0
        %v1018 = vadd.f32 0.0, %v1017
        %v1019 = vpop.f32.mrf.mxu0
        %1020 = vdwg.mxu0
        %v1021 = vld [vmem:[#allocation2] sm:$0xff]
        %v1022 = vld [vmem:[#allocation2 + $0x8] sm:$0xff]
        %v1023 = vld [vmem:[#allocation2 + $0x10] sm:$0xff]
        %v1024 = vld [vmem:[#allocation2 + $0x18] sm:$0xff]
        %v1025 = vld [vmem:[#allocation2 + $0x20] sm:$0xff]
        %v1026 = vld [vmem:[#allocation2 + $0x28] sm:$0xff]
        %v1027 = vld [vmem:[#allocation2 + $0x30] sm:$0xff]
        %v1028 = vld [vmem:[#allocation2 + $0x38] sm:$0xff]
        %v1029 = vld [vmem:[%s255] sm:$0xff]
        %v1030 = vld [vmem:[%s255 + $0x8] sm:$0xff]
        %v1031 = vld [vmem:[%s255 + $0x10] sm:$0xff]
        %v1032 = vld [vmem:[%s255 + $0x18] sm:$0xff]
        %v1033 = vld [vmem:[%s255 + $0x20] sm:$0xff]
        %v1034 = vld [vmem:[%s255 + $0x28] sm:$0xff]
        %v1035 = vld [vmem:[%s255 + $0x30] sm:$0xff]
        %v1036 = vld [vmem:[%s255 + $0x38] sm:$0xff]
        %v1037 = vsub.f32 %v983, %v1029
        %v1038 = vsub.f32 %v988, %v1030
        %v1039 = vsub.f32 %v993, %v1031
        %v1040 = vsub.f32 %v998, %v1032
        %v1041 = vsub.f32 %v1003, %v1033
        %v1042 = vsub.f32 %v1008, %v1034
        %v1043 = vsub.f32 %v1013, %v1035
        %v1044 = vsub.f32 %v1018, %v1036
        %v1045 = vand.u32 2147483647, %v1037
        %v1046 = vand.u32 2147483647, %v1038
        %v1047 = vand.u32 2147483647, %v1039
        %v1048 = vand.u32 2147483647, %v1040
        %v1049 = vand.u32 2147483647, %v1041
        %v1050 = vand.u32 2147483647, %v1042
        %v1051 = vand.u32 2147483647, %v1043
        %v1052 = vand.u32 2147483647, %v1044
        %v1053 = vadd.f32 %v1021, %v1045
        %v1054 = vadd.f32 %v1022, %v1046
        %v1055 = vadd.f32 %v1023, %v1047
        %v1056 = vadd.f32 %v1024, %v1048
        %v1057 = vadd.f32 %v1025, %v1049
        %v1058 = vadd.f32 %v1026, %v1050
        %v1059 = vadd.f32 %v1027, %v1051
        %v1060 = vadd.f32 %v1028, %v1052
        %vm1061 = vcmask 64512
        %1062 = vst.msk [vmem:[#allocation2] sm:$0xff] %vm1061, %v1053
        %1063 = vst.msk [vmem:[#allocation2 + $0x8] sm:$0xff] %vm1061, %v1054
        %1064 = vst.msk [vmem:[#allocation2 + $0x10] sm:$0xff] %vm1061, %v1055
        %1065 = vst.msk [vmem:[#allocation2 + $0x18] sm:$0xff] %vm1061, %v1056
        %1066 = vst.msk [vmem:[#allocation2 + $0x20] sm:$0xff] %vm1061, %v1057
        %1067 = vst.msk [vmem:[#allocation2 + $0x28] sm:$0xff] %vm1061, %v1058
        %1068 = vst.msk [vmem:[#allocation2 + $0x30] sm:$0xff] %vm1061, %v1059
        %1069 = vst.msk [vmem:[#allocation2 + $0x38] sm:$0xff] %vm1061, %v1060
        // Predicated region
        $region45: #{tpu_custom_call.1} parent=35 // pred_check
          %p1070 = pneg %p261
        $region46: #{tpu_custom_call.1} parent=35 // pred_check_branch
          %1072 = sbr.rel (%p1070) target = $region48
        $region47: #{tpu_custom_call.1} parent=35 // pred_region
          %v1073 = vld [vmem:[#allocation2] sm:$0xff]
          %v1074 = vld [vmem:[#allocation2 + $0x8] sm:$0xff]
          %v1075 = vld [vmem:[#allocation2 + $0x10] sm:$0xff]
          %v1076 = vld [vmem:[#allocation2 + $0x18] sm:$0xff]
          %v1077 = vld [vmem:[#allocation2 + $0x20] sm:$0xff]
          %v1078 = vld [vmem:[#allocation2 + $0x28] sm:$0xff]
          %v1079 = vld [vmem:[#allocation2 + $0x30] sm:$0xff]
          %v1080 = vld [vmem:[#allocation2 + $0x38] sm:$0xff]
          %v1081 = vsel %vm1061, %v1073, 0.0
          %v1082 = vsel %vm1061, %v1074, 0.0
          %v1083 = vadd.f32 %v1081, %v1082
          %v1084 = vsel %vm1061, %v1075, 0.0
          %v1085 = vadd.f32 %v1083, %v1084
          %v1086 = vsel %vm1061, %v1076, 0.0
          %v1087 = vadd.f32 %v1085, %v1086
          %v1088 = vsel %vm1061, %v1077, 0.0
          %v1089 = vadd.f32 %v1087, %v1088
          %v1090 = vsel %vm1061, %v1078, 0.0
          %v1091 = vadd.f32 %v1089, %v1090
          %v1092 = vsel %vm1061, %v1079, 0.0
          %v1093 = vadd.f32 %v1091, %v1092
          %v1094 = vsel %vm1061, %v1080, 0.0
          %v1095 = vadd.f32 %v1093, %v1094
          %1096 = vadd.xlane.f32.xlu0 %v1095
          %v1097 = vpop.xlane.xlu0 %1096
          %v1098 = vrot.slane %v1097, 4
          %v1099 = vadd.f32 %v1097, %v1098
          %v1100 = vrot.slane %v1099, 2
          %v1101 = vadd.f32 %v1099, %v1100
          %v1102 = vrot.slane %v1101, 1
          %v1103 = vadd.f32 %v1101, %v1102
          %s1104 = vtos %v1103
          %v1105 = vstv %s1104
          %vm1106 = vcmask 0
          %1107 = vst.msk [vmem:[%s260] sm:$0x1] %vm1106, %v1105
        $region48: #{tpu_custom_call.1} parent=35 // pred_fallthru
          _
        %p1108 = scmp.lt.s32.totalorder %s22, 1
        %s1109 = scalar_select %p1108, %s22, 1
        %s1110 = scalar_lea.vmem %s4, %s1109
        // Predicated region
        $region49: #{tpu_custom_call.1} parent=35 // pred_check
          %p1111 = pneg %p146
        $region50: #{tpu_custom_call.1} parent=35 // pred_check_branch
          %1113 = sbr.rel (%p1111) target = $region52
        $region51: #{tpu_custom_call.1} parent=35 // pred_region
          _
        $region52: #{tpu_custom_call.1} parent=35 // pred_fallthru
          _
      $region36: #{tpu_custom_call.1} parent=5 // pred_fallthru
        _
      %p1114 = scmp.le.s32.totalorder 2, %s13
      // Predicated region
      $region53: #{tpu_custom_call.1} parent=5 // pred_check
        %p1115 = pneg %p1114
      $region54: #{tpu_custom_call.1} parent=5 // pred_check_branch
        %1117 = sbr.rel (%p1115) target = $region56
      $region55: #{tpu_custom_call.1} parent=5 // pred_region
        %s1118 = ssub.s32 %s13, 2
        // Predicated region
        $region57: #{tpu_custom_call.1} parent=55 // pred_check
          %p1119 = pneg %p152
        $region58: #{tpu_custom_call.1} parent=55 // pred_check_branch
          %1121 = sbr.rel (%p1119) target = $region60
        $region59: #{tpu_custom_call.1} parent=55 // pred_region
          %p1122 = scmp.lt.s32.totalorder %s24, 1
          %s1123 = scalar_select %p1122, %s24, 1
          %s1124 = scalar_lea.vmem %s4, %s1123
        $region60: #{tpu_custom_call.1} parent=55 // pred_fallthru
          _
      $region56: #{tpu_custom_call.1} parent=5 // pred_fallthru
        _
    $region6: #{tpu_custom_call.1} parent=1 // loop_footer
      %s17 = sadd.s32 1, %s13
    $region7: #{tpu_custom_call.1} parent=1 // loop_footer_branch
      %12 = sbr.rel target = $region3
    $region8: #{tpu_custom_call.1} parent=1 // loop_exit
      _
    %1125 = vsyncpa [#allocation4], 1
    %s1126 = scalar_lea.sflag [#allocation4], 1
    %1127 = vsyncpa %s1126, 1

</llo_original>
